<compile_context>
chip_gen: v7x
topology: tpu7x:2x2x1
jax: 0.10.0
libtpu: 0.0.40
codegen_flags: <defaults>
</compile_context>

<pallas_src>
import functools

import jax
import jax.numpy as jnp
from jax import lax
from jax.experimental import pallas as pl
from jax.experimental.pallas import tpu as pltpu


def _mmd_kernel(src_ref, tgt_ref, loss_ref, *, kernel_mul, kernel_num):
    src = src_ref[...]                                   # (B, D), native dtype
    tgt = tgt_ref[...]                                   # (B, D), native dtype
    b = src.shape[0]
    n = 2 * b

    # Gram blocks on the MXU. Contract the last dims of both operands directly
    # (((1,), (1,)), ((), ())) — no explicit transpose / VMEM relayout. bf16
    # inputs stay on the native bf16 MXU path with an f32 accumulator.
    contract = (((1,), (1,)), ((), ()))
    gram_xx = lax.dot_general(src, src, contract, preferred_element_type=jnp.float32)
    gram_yy = lax.dot_general(tgt, tgt, contract, preferred_element_type=jnp.float32)
    gram_xy = lax.dot_general(src, tgt, contract, preferred_element_type=jnp.float32)

    sf = src.astype(jnp.float32)
    tf = tgt.astype(jnp.float32)
    sq_x = jnp.sum(sf * sf, axis=1, keepdims=True)       # (B, 1) f32
    sq_y = jnp.sum(tf * tf, axis=1, keepdims=True)       # (B, 1) f32

    # ||a_i||^2 + ||b_j||^2 - 2 a_i.b_j ; clamp tiny negative cancellation
    # noise (the diff-based reference is exactly >= 0 with zero diagonals).
    l2_xx = jnp.maximum(sq_x + sq_x.T - 2.0 * gram_xx, 0.0)   # (B, B) f32
    l2_yy = jnp.maximum(sq_y + sq_y.T - 2.0 * gram_yy, 0.0)   # (B, B) f32
    l2_xy = jnp.maximum(sq_x + sq_y.T - 2.0 * gram_xy, 0.0)   # (B, B) f32

    # Sum over the full (2B, 2B) distance matrix: XX + YY + XY + YX, where
    # L2_yx == L2_xy^T, hence the 2x on the cross term.
    l2_total = jnp.sum(l2_xx) + jnp.sum(l2_yy) + 2.0 * jnp.sum(l2_xy)
    bandwidth = l2_total * (1.0 / float(n * n - n))
    bandwidth = bandwidth * (1.0 / (kernel_mul ** (kernel_num // 2)))

    def quadrant_sum(e_xx, e_yy, e_xy):
        # mean(XX + YY - XY - YX) numerator: the kernel matrix is symmetric,
        # so sum(K_xy) == sum(K_yx).
        return jnp.sum(e_xx) + jnp.sum(e_yy) - 2.0 * jnp.sum(e_xy)

    # term_i = exp(l2 * (-1 / (bandwidth * kernel_mul**i)))  (scalar divisor
    # hoisted out of the vector op: one scalar reciprocal, then a vmul).
    if kernel_mul == 2.0:
        # One EUP exp per quadrant for the widest bandwidth (i = kernel_num-1);
        # every narrower-bandwidth term is the elementwise square of the
        # previous one (pure VALU), cutting EUP transcendentals kernel_num-fold.
        neg_inv = -1.0 / (bandwidth * (kernel_mul ** (kernel_num - 1)))
        e_xx = jnp.exp(l2_xx * neg_inv)
        e_yy = jnp.exp(l2_yy * neg_inv)
        e_xy = jnp.exp(l2_xy * neg_inv)
        acc = quadrant_sum(e_xx, e_yy, e_xy)      # init with first term (no zeros+add)
        for _ in range(kernel_num - 1):
            e_xx = e_xx * e_xx
            e_yy = e_yy * e_yy
            e_xy = e_xy * e_xy
            acc = acc + quadrant_sum(e_xx, e_yy, e_xy)
    else:
        # General kernel_mul: one exp per bandwidth per quadrant, still with a
        # hoisted scalar reciprocal instead of a full-matrix divide.
        neg_inv0 = -1.0 / (bandwidth * (kernel_mul ** (kernel_num - 1)))
        acc = quadrant_sum(jnp.exp(l2_xx * neg_inv0),
                           jnp.exp(l2_yy * neg_inv0),
                           jnp.exp(l2_xy * neg_inv0))
        for i in range(kernel_num - 2, -1, -1):
            neg_inv = -1.0 / (bandwidth * (kernel_mul ** i))
            acc = acc + quadrant_sum(jnp.exp(l2_xx * neg_inv),
                                     jnp.exp(l2_yy * neg_inv),
                                     jnp.exp(l2_xy * neg_inv))

    loss_ref[0, 0] = acc * (1.0 / float(b * b))


def mmd_loss(source, target, kernel_mul=2.0, kernel_num=5):
    """Pallas TPU implementation of MMD_loss.forward(source, target)."""
    assert source.shape == target.shape and source.ndim == 2
    B, D = source.shape
    kernel_mul = float(kernel_mul)
    kernel_num = int(kernel_num)

    kernel = functools.partial(
        _mmd_kernel, kernel_mul=kernel_mul, kernel_num=kernel_num
    )

    itemsize = jnp.dtype(source.dtype).itemsize
    # Live VMEM: three B×B f32 L2 blocks + three exp blocks + transient grams,
    # plus the two (B, D) input tiles (double-buffered), plus slack. Clamp into
    # [4 MiB, 64 MiB] so the request is valid on every TPU generation
    # (v7x has 64 MiB of VMEM per TensorCore).
    vmem_est = 9 * B * B * 4 + 4 * B * D * itemsize + (1 << 20)
    vmem_limit = int(min(64 * 1024 * 1024, max(4 * 1024 * 1024, vmem_est)))

    num_exp = 3 if kernel_mul == 2.0 else 3 * kernel_num
    cost = pl.CostEstimate(
        flops=3 * 2 * B * B * D + 12 * kernel_num * B * B,
        transcendentals=num_exp * B * B,
        bytes_accessed=2 * B * D * itemsize + 4,
    )

    out = pl.pallas_call(
        kernel,
        out_shape=jax.ShapeDtypeStruct((1, 1), jnp.float32),
        in_specs=[pl.BlockSpec((B, D), lambda: (0, 0)),
                  pl.BlockSpec((B, D), lambda: (0, 0))],
        # Scalar loss in SMEM: avoids the padded (8,128) VMEM tile + masked
        # partial store for a 4-byte result.
        out_specs=pl.BlockSpec(memory_space=pltpu.MemorySpace.SMEM),
        compiler_params=pltpu.CompilerParams(vmem_limit_bytes=vmem_limit),
        cost_estimate=cost,
    )(source, target)
    return out[0, 0]


def _mmd_loss_ref(source, target, kernel_mul=2.0, kernel_num=5):
    """Pure-JAX reference mirroring the PyTorch module (for verification)."""
    b = source.shape[0]
    total = jnp.concatenate([source, target], axis=0).astype(jnp.float32)
    n = total.shape[0]
    diff = total[None, :, :] - total[:, None, :]
    l2 = jnp.sum(diff * diff, axis=2)
    bandwidth = jnp.sum(l2) / (n * n - n)
    bandwidth = bandwidth / (kernel_mul ** (kernel_num // 2))
    kernels = sum(
        jnp.exp(-l2 / (bandwidth * kernel_mul ** i)) for i in range(kernel_num)
    )
    xx = kernels[:b, :b]
    yy = kernels[b:, b:]
    xy = kernels[:b, b:]
    yx = kernels[b:, :b]
    return jnp.mean(xx + yy - xy - yx)


if __name__ == "__main__":
    # MMD_loss takes flat feature vectors: (batch, hidden).
    B, D = 8, 32
    key = jax.random.PRNGKey(0)
    k_src, k_tgt = jax.random.split(key)
    source = jax.random.normal(k_src, (B, D), dtype=jnp.float32)
    target = jax.random.normal(k_tgt, (B, D), dtype=jnp.float32) + 0.5

    loss = mmd_loss(source, target, kernel_mul=2.0, kernel_num=5)
    loss = jax.block_until_ready(loss)

    ref = _mmd_loss_ref(source, target, kernel_mul=2.0, kernel_num=5)
    assert jnp.allclose(loss, ref, rtol=1e-4, atol=1e-5), (loss, ref)

    print("KERNEL_OK")
</pallas_src>

<mosaic_0001>
module attributes {stable_mosaic.version = 11 : i64} {
  func.func @_mmd_kernel(%arg0: memref<8x32xf32, #tpu.memory_space<vmem>>, %arg1: memref<8x32xf32, #tpu.memory_space<vmem>>, %arg2: memref<1x1xf32, #tpu.memory_space<smem>>) attributes {dimension_semantics = [], scalar_prefetch = 0 : i64, scratch_operands = 0 : i64, tpu.core_type = #tpu.core_type<tc>} {
    %c0 = arith.constant 0 : index
    %c0_0 = arith.constant 0 : index
    %0 = vector.load %arg0[%c0, %c0_0] : memref<8x32xf32, #tpu.memory_space<vmem>>, vector<8x32xf32>
    %c0_1 = arith.constant 0 : index
    %c0_2 = arith.constant 0 : index
    %1 = vector.load %arg1[%c0_1, %c0_2] : memref<8x32xf32, #tpu.memory_space<vmem>>, vector<8x32xf32>
    %cst = arith.constant dense<0.000000e+00> : vector<8x8xf32>
    %2 = tpu.matmul %0, %0, %cst {dimension_numbers = #tpu.dot_dimension_numbers<[1], [1], [0], [0], [0, 0, 1, 0], [], []>} : vector<8x32xf32>, vector<8x32xf32>, vector<8x8xf32> -> vector<8x8xf32>
    %cst_3 = arith.constant dense<0.000000e+00> : vector<8x8xf32>
    %3 = tpu.matmul %1, %1, %cst_3 {dimension_numbers = #tpu.dot_dimension_numbers<[1], [1], [0], [0], [0, 0, 1, 0], [], []>} : vector<8x32xf32>, vector<8x32xf32>, vector<8x8xf32> -> vector<8x8xf32>
    %cst_4 = arith.constant dense<0.000000e+00> : vector<8x8xf32>
    %4 = tpu.matmul %0, %1, %cst_4 {dimension_numbers = #tpu.dot_dimension_numbers<[1], [1], [0], [0], [0, 0, 1, 0], [], []>} : vector<8x32xf32>, vector<8x32xf32>, vector<8x8xf32> -> vector<8x8xf32>
    %5 = arith.mulf %0, %0 : vector<8x32xf32>
    %cst_5 = arith.constant dense<0.000000e+00> : vector<8xf32>
    %6 = vector.multi_reduction <add>, %5, %cst_5 [1] : vector<8x32xf32> to vector<8xf32>
    %7 = vector.shape_cast %6 : vector<8xf32> to vector<8x1xf32>
    %8 = arith.mulf %1, %1 : vector<8x32xf32>
    %cst_6 = arith.constant dense<0.000000e+00> : vector<8xf32>
    %9 = vector.multi_reduction <add>, %8, %cst_6 [1] : vector<8x32xf32> to vector<8xf32>
    %10 = vector.shape_cast %9 : vector<8xf32> to vector<8x1xf32>
    %11 = tpu.transpose %7, [1, 0] : vector<8x1xf32> -> vector<1x8xf32>
    %12 = vector.broadcast %7 : vector<8x1xf32> to vector<8x8xf32>
    %13 = vector.broadcast %11 : vector<1x8xf32> to vector<8x8xf32>
    %14 = arith.addf %12, %13 : vector<8x8xf32>
    %cst_7 = arith.constant 2.000000e+00 : f32
    %15 = vector.broadcast %cst_7 : f32 to vector<8x8xf32>
    %16 = arith.mulf %15, %2 : vector<8x8xf32>
    %17 = arith.subf %14, %16 : vector<8x8xf32>
    %cst_8 = arith.constant 0.000000e+00 : f32
    %18 = vector.broadcast %cst_8 : f32 to vector<8x8xf32>
    %19 = arith.maximumf %17, %18 : vector<8x8xf32>
    %20 = tpu.transpose %10, [1, 0] : vector<8x1xf32> -> vector<1x8xf32>
    %21 = vector.broadcast %10 : vector<8x1xf32> to vector<8x8xf32>
    %22 = vector.broadcast %20 : vector<1x8xf32> to vector<8x8xf32>
    %23 = arith.addf %21, %22 : vector<8x8xf32>
    %cst_9 = arith.constant 2.000000e+00 : f32
    %24 = vector.broadcast %cst_9 : f32 to vector<8x8xf32>
    %25 = arith.mulf %24, %3 : vector<8x8xf32>
    %26 = arith.subf %23, %25 : vector<8x8xf32>
    %cst_10 = arith.constant 0.000000e+00 : f32
    %27 = vector.broadcast %cst_10 : f32 to vector<8x8xf32>
    %28 = arith.maximumf %26, %27 : vector<8x8xf32>
    %29 = tpu.transpose %10, [1, 0] : vector<8x1xf32> -> vector<1x8xf32>
    %30 = vector.broadcast %7 : vector<8x1xf32> to vector<8x8xf32>
    %31 = vector.broadcast %29 : vector<1x8xf32> to vector<8x8xf32>
    %32 = arith.addf %30, %31 : vector<8x8xf32>
    %cst_11 = arith.constant 2.000000e+00 : f32
    %33 = vector.broadcast %cst_11 : f32 to vector<8x8xf32>
    %34 = arith.mulf %33, %4 : vector<8x8xf32>
    %35 = arith.subf %32, %34 : vector<8x8xf32>
    %cst_12 = arith.constant 0.000000e+00 : f32
    %36 = vector.broadcast %cst_12 : f32 to vector<8x8xf32>
    %37 = arith.maximumf %35, %36 : vector<8x8xf32>
    %38 = vector.shape_cast %19 : vector<8x8xf32> to vector<1x8x8xf32>
    %cst_13 = arith.constant dense<0.000000e+00> : vector<1xf32>
    %39 = vector.multi_reduction <add>, %38, %cst_13 [1, 2] : vector<1x8x8xf32> to vector<1xf32>
    %40 = vector.shape_cast %39 : vector<1xf32> to vector<1x1x1xf32>
    %41 = vector.extract %40[0, 0, 0] : f32 from vector<1x1x1xf32>
    %42 = vector.shape_cast %28 : vector<8x8xf32> to vector<1x8x8xf32>
    %cst_14 = arith.constant dense<0.000000e+00> : vector<1xf32>
    %43 = vector.multi_reduction <add>, %42, %cst_14 [1, 2] : vector<1x8x8xf32> to vector<1xf32>
    %44 = vector.shape_cast %43 : vector<1xf32> to vector<1x1x1xf32>
    %45 = vector.extract %44[0, 0, 0] : f32 from vector<1x1x1xf32>
    %46 = arith.addf %41, %45 : f32
    %47 = vector.shape_cast %37 : vector<8x8xf32> to vector<1x8x8xf32>
    %cst_15 = arith.constant dense<0.000000e+00> : vector<1xf32>
    %48 = vector.multi_reduction <add>, %47, %cst_15 [1, 2] : vector<1x8x8xf32> to vector<1xf32>
    %49 = vector.shape_cast %48 : vector<1xf32> to vector<1x1x1xf32>
    %50 = vector.extract %49[0, 0, 0] : f32 from vector<1x1x1xf32>
    %cst_16 = arith.constant 2.000000e+00 : f32
    %51 = arith.mulf %cst_16, %50 : f32
    %52 = arith.addf %46, %51 : f32
    %cst_17 = arith.constant 0.00416666688 : f32
    %53 = arith.mulf %52, %cst_17 : f32
    %cst_18 = arith.constant 2.500000e-01 : f32
    %54 = arith.mulf %53, %cst_18 : f32
    %cst_19 = arith.constant 1.600000e+01 : f32
    %55 = arith.mulf %54, %cst_19 : f32
    %cst_20 = arith.constant -1.000000e+00 : f32
    %56 = arith.divf %cst_20, %55 : f32
    %57 = vector.broadcast %56 : f32 to vector<8x8xf32>
    %58 = arith.mulf %19, %57 : vector<8x8xf32>
    %59 = math.exp %58 : vector<8x8xf32>
    %60 = vector.broadcast %56 : f32 to vector<8x8xf32>
    %61 = arith.mulf %28, %60 : vector<8x8xf32>
    %62 = math.exp %61 : vector<8x8xf32>
    %63 = vector.broadcast %56 : f32 to vector<8x8xf32>
    %64 = arith.mulf %37, %63 : vector<8x8xf32>
    %65 = math.exp %64 : vector<8x8xf32>
    %66 = vector.shape_cast %59 : vector<8x8xf32> to vector<1x8x8xf32>
    %cst_21 = arith.constant dense<0.000000e+00> : vector<1xf32>
    %67 = vector.multi_reduction <add>, %66, %cst_21 [1, 2] : vector<1x8x8xf32> to vector<1xf32>
    %68 = vector.shape_cast %67 : vector<1xf32> to vector<1x1x1xf32>
    %69 = vector.extract %68[0, 0, 0] : f32 from vector<1x1x1xf32>
    %70 = vector.shape_cast %62 : vector<8x8xf32> to vector<1x8x8xf32>
    %cst_22 = arith.constant dense<0.000000e+00> : vector<1xf32>
    %71 = vector.multi_reduction <add>, %70, %cst_22 [1, 2] : vector<1x8x8xf32> to vector<1xf32>
    %72 = vector.shape_cast %71 : vector<1xf32> to vector<1x1x1xf32>
    %73 = vector.extract %72[0, 0, 0] : f32 from vector<1x1x1xf32>
    %74 = arith.addf %69, %73 : f32
    %75 = vector.shape_cast %65 : vector<8x8xf32> to vector<1x8x8xf32>
    %cst_23 = arith.constant dense<0.000000e+00> : vector<1xf32>
    %76 = vector.multi_reduction <add>, %75, %cst_23 [1, 2] : vector<1x8x8xf32> to vector<1xf32>
    %77 = vector.shape_cast %76 : vector<1xf32> to vector<1x1x1xf32>
    %78 = vector.extract %77[0, 0, 0] : f32 from vector<1x1x1xf32>
    %cst_24 = arith.constant 2.000000e+00 : f32
    %79 = arith.mulf %cst_24, %78 : f32
    %80 = arith.subf %74, %79 : f32
    %81 = arith.mulf %59, %59 : vector<8x8xf32>
    %82 = arith.mulf %62, %62 : vector<8x8xf32>
    %83 = arith.mulf %65, %65 : vector<8x8xf32>
    %84 = vector.shape_cast %81 : vector<8x8xf32> to vector<1x8x8xf32>
    %cst_25 = arith.constant dense<0.000000e+00> : vector<1xf32>
    %85 = vector.multi_reduction <add>, %84, %cst_25 [1, 2] : vector<1x8x8xf32> to vector<1xf32>
    %86 = vector.shape_cast %85 : vector<1xf32> to vector<1x1x1xf32>
    %87 = vector.extract %86[0, 0, 0] : f32 from vector<1x1x1xf32>
    %88 = vector.shape_cast %82 : vector<8x8xf32> to vector<1x8x8xf32>
    %cst_26 = arith.constant dense<0.000000e+00> : vector<1xf32>
    %89 = vector.multi_reduction <add>, %88, %cst_26 [1, 2] : vector<1x8x8xf32> to vector<1xf32>
    %90 = vector.shape_cast %89 : vector<1xf32> to vector<1x1x1xf32>
    %91 = vector.extract %90[0, 0, 0] : f32 from vector<1x1x1xf32>
    %92 = arith.addf %87, %91 : f32
    %93 = vector.shape_cast %83 : vector<8x8xf32> to vector<1x8x8xf32>
    %cst_27 = arith.constant dense<0.000000e+00> : vector<1xf32>
    %94 = vector.multi_reduction <add>, %93, %cst_27 [1, 2] : vector<1x8x8xf32> to vector<1xf32>
    %95 = vector.shape_cast %94 : vector<1xf32> to vector<1x1x1xf32>
    %96 = vector.extract %95[0, 0, 0] : f32 from vector<1x1x1xf32>
    %cst_28 = arith.constant 2.000000e+00 : f32
    %97 = arith.mulf %cst_28, %96 : f32
    %98 = arith.subf %92, %97 : f32
    %99 = arith.addf %80, %98 : f32
    %100 = arith.mulf %81, %81 : vector<8x8xf32>
    %101 = arith.mulf %82, %82 : vector<8x8xf32>
    %102 = arith.mulf %83, %83 : vector<8x8xf32>
    %103 = vector.shape_cast %100 : vector<8x8xf32> to vector<1x8x8xf32>
    %cst_29 = arith.constant dense<0.000000e+00> : vector<1xf32>
    %104 = vector.multi_reduction <add>, %103, %cst_29 [1, 2] : vector<1x8x8xf32> to vector<1xf32>
    %105 = vector.shape_cast %104 : vector<1xf32> to vector<1x1x1xf32>
    %106 = vector.extract %105[0, 0, 0] : f32 from vector<1x1x1xf32>
    %107 = vector.shape_cast %101 : vector<8x8xf32> to vector<1x8x8xf32>
    %cst_30 = arith.constant dense<0.000000e+00> : vector<1xf32>
    %108 = vector.multi_reduction <add>, %107, %cst_30 [1, 2] : vector<1x8x8xf32> to vector<1xf32>
    %109 = vector.shape_cast %108 : vector<1xf32> to vector<1x1x1xf32>
    %110 = vector.extract %109[0, 0, 0] : f32 from vector<1x1x1xf32>
    %111 = arith.addf %106, %110 : f32
    %112 = vector.shape_cast %102 : vector<8x8xf32> to vector<1x8x8xf32>
    %cst_31 = arith.constant dense<0.000000e+00> : vector<1xf32>
    %113 = vector.multi_reduction <add>, %112, %cst_31 [1, 2] : vector<1x8x8xf32> to vector<1xf32>
    %114 = vector.shape_cast %113 : vector<1xf32> to vector<1x1x1xf32>
    %115 = vector.extract %114[0, 0, 0] : f32 from vector<1x1x1xf32>
    %cst_32 = arith.constant 2.000000e+00 : f32
    %116 = arith.mulf %cst_32, %115 : f32
    %117 = arith.subf %111, %116 : f32
    %118 = arith.addf %99, %117 : f32
    %119 = arith.mulf %100, %100 : vector<8x8xf32>
    %120 = arith.mulf %101, %101 : vector<8x8xf32>
    %121 = arith.mulf %102, %102 : vector<8x8xf32>
    %122 = vector.shape_cast %119 : vector<8x8xf32> to vector<1x8x8xf32>
    %cst_33 = arith.constant dense<0.000000e+00> : vector<1xf32>
    %123 = vector.multi_reduction <add>, %122, %cst_33 [1, 2] : vector<1x8x8xf32> to vector<1xf32>
    %124 = vector.shape_cast %123 : vector<1xf32> to vector<1x1x1xf32>
    %125 = vector.extract %124[0, 0, 0] : f32 from vector<1x1x1xf32>
    %126 = vector.shape_cast %120 : vector<8x8xf32> to vector<1x8x8xf32>
    %cst_34 = arith.constant dense<0.000000e+00> : vector<1xf32>
    %127 = vector.multi_reduction <add>, %126, %cst_34 [1, 2] : vector<1x8x8xf32> to vector<1xf32>
    %128 = vector.shape_cast %127 : vector<1xf32> to vector<1x1x1xf32>
    %129 = vector.extract %128[0, 0, 0] : f32 from vector<1x1x1xf32>
    %130 = arith.addf %125, %129 : f32
    %131 = vector.shape_cast %121 : vector<8x8xf32> to vector<1x8x8xf32>
    %cst_35 = arith.constant dense<0.000000e+00> : vector<1xf32>
    %132 = vector.multi_reduction <add>, %131, %cst_35 [1, 2] : vector<1x8x8xf32> to vector<1xf32>
    %133 = vector.shape_cast %132 : vector<1xf32> to vector<1x1x1xf32>
    %134 = vector.extract %133[0, 0, 0] : f32 from vector<1x1x1xf32>
    %cst_36 = arith.constant 2.000000e+00 : f32
    %135 = arith.mulf %cst_36, %134 : f32
    %136 = arith.subf %130, %135 : f32
    %137 = arith.addf %118, %136 : f32
    %138 = arith.mulf %119, %119 : vector<8x8xf32>
    %139 = arith.mulf %120, %120 : vector<8x8xf32>
    %140 = arith.mulf %121, %121 : vector<8x8xf32>
    %141 = vector.shape_cast %138 : vector<8x8xf32> to vector<1x8x8xf32>
    %cst_37 = arith.constant dense<0.000000e+00> : vector<1xf32>
    %142 = vector.multi_reduction <add>, %141, %cst_37 [1, 2] : vector<1x8x8xf32> to vector<1xf32>
    %143 = vector.shape_cast %142 : vector<1xf32> to vector<1x1x1xf32>
    %144 = vector.extract %143[0, 0, 0] : f32 from vector<1x1x1xf32>
    %145 = vector.shape_cast %139 : vector<8x8xf32> to vector<1x8x8xf32>
    %cst_38 = arith.constant dense<0.000000e+00> : vector<1xf32>
    %146 = vector.multi_reduction <add>, %145, %cst_38 [1, 2] : vector<1x8x8xf32> to vector<1xf32>
    %147 = vector.shape_cast %146 : vector<1xf32> to vector<1x1x1xf32>
    %148 = vector.extract %147[0, 0, 0] : f32 from vector<1x1x1xf32>
    %149 = arith.addf %144, %148 : f32
    %150 = vector.shape_cast %140 : vector<8x8xf32> to vector<1x8x8xf32>
    %cst_39 = arith.constant dense<0.000000e+00> : vector<1xf32>
    %151 = vector.multi_reduction <add>, %150, %cst_39 [1, 2] : vector<1x8x8xf32> to vector<1xf32>
    %152 = vector.shape_cast %151 : vector<1xf32> to vector<1x1x1xf32>
    %153 = vector.extract %152[0, 0, 0] : f32 from vector<1x1x1xf32>
    %cst_40 = arith.constant 2.000000e+00 : f32
    %154 = arith.mulf %cst_40, %153 : f32
    %155 = arith.subf %149, %154 : f32
    %156 = arith.addf %137, %155 : f32
    %cst_41 = arith.constant 1.562500e-02 : f32
    %157 = arith.mulf %156, %cst_41 : f32
    %c0_42 = arith.constant 0 : index
    %c0_43 = arith.constant 0 : index
    %158 = memref.load %arg2[%c0_42, %c0_43] : memref<1x1xf32, #tpu.memory_space<smem>>
    memref.store %157, %arg2[%c0_42, %c0_43] : memref<1x1xf32, #tpu.memory_space<smem>>
    return
  }
}

</mosaic_0001>

<llo_original>
// kernel: tpu_custom_call.1
$region0: #{tpu_custom_call.1}
  #allocation0 [shape = 'u32[]', space=smem, size = 0x4, offset = 0x4, fixed_abs, tag = 'smem constant byte address 0x4 - core index']
  #allocation1 [shape = 'u32[144,128]{1,0:T(1,128)}', space=vmem, size = 0x12000, scoped, tag = 'internal scratch']
  %s0 = inlined_call_operand.hbm [shape: f32[8,32], index: 0, kind: input, shape index: {}]
  %s1 = inlined_call_operand.hbm [shape: f32[8,32], index: 1, kind: input, shape index: {}]
  %s2 = inlined_call_operand.hbm [shape: f32[1,1], index: 2, kind: output, shape index: {}]
  %s3 = sld [smem:[#allocation0]]
  $region26: #{tpu_custom_call.1} parent=0
    _
  %s5 = ssub.s32 1, %s3
  %s6 = scalar_select 0, %s5, %s3
  $region1: #{tpu_custom_call.1} parent=0
    #allocation2 [shape = 'u8[4096]{0}', space=vmem, size = 0x1000, scoped, tag = 'input window, operand 0, single buffered']
    #allocation3 [shape = 's32[1]{0}', space=sflag, size = 0x4, scoped, tag = 'scoped memory for tpu_custom_call.1']
    #allocation4 [shape = 's32[1]{0}', space=sflag, size = 0x4, scoped, tag = 'scoped memory for tpu_custom_call.1']
    #allocation5 [shape = 'u8[4096]{0}', space=vmem, size = 0x1000, scoped, tag = 'input window, operand 1, single buffered']
    #allocation6 [shape = 's32[1]{0}', space=sflag, size = 0x4, scoped, tag = 'scoped memory for tpu_custom_call.1']
    #allocation7 [shape = 'u8[512]{0}', space=smem, size = 0x200, scoped, tag = 'output window, operand 0, single buffered']
    %7 = vsyncpa [#allocation3], 0
    %8 = vsyncpa [#allocation6], 0
    %9 = vsyncpa [#allocation4], 0
    // Predicated region
    $region2: #{tpu_custom_call.1} parent=1 // pred_check
      _
    $region3: #{tpu_custom_call.1} parent=1 // pred_check_branch
      %11 = sbr.rel (0) target = $region5
    $region4: #{tpu_custom_call.1} parent=1 // pred_region
      %s13 = ssub.s32 128, 128
      %14 = vsyncadd [#allocation3], %s13
      %s16 = sshll.u32 [#allocation2], 4
      %s17 = int_to_ptr.vmem [resolvable:$true] %s16
      %19 = dma.hbm_to_vmem [thread:$0]  %s0, 128, %s17, [#allocation3]
    $region5: #{tpu_custom_call.1} parent=1 // pred_fallthru
      _
    // Predicated region
    $region6: #{tpu_custom_call.1} parent=1 // pred_check
      _
    $region7: #{tpu_custom_call.1} parent=1 // pred_check_branch
      %21 = sbr.rel (0) target = $region9
    $region8: #{tpu_custom_call.1} parent=1 // pred_region
      %s23 = ssub.s32 128, 128
      %24 = vsyncadd [#allocation6], %s23
      %s26 = sshll.u32 [#allocation5], 4
      %s27 = int_to_ptr.vmem [resolvable:$true] %s26
      %29 = dma.hbm_to_vmem [thread:$0]  %s1, 128, %s27, [#allocation6]
    $region9: #{tpu_custom_call.1} parent=1 // pred_fallthru
      _
    // Predicated region
    $region10: #{tpu_custom_call.1} parent=1 // pred_check
      _
    $region11: #{tpu_custom_call.1} parent=1 // pred_check_branch
      %31 = sbr.rel (0) target = $region13
    $region12: #{tpu_custom_call.1} parent=1 // pred_region
      %32 = dma.done [#allocation3], 128
    $region13: #{tpu_custom_call.1} parent=1 // pred_fallthru
      _
    // Predicated region
    $region14: #{tpu_custom_call.1} parent=1 // pred_check
      _
    $region15: #{tpu_custom_call.1} parent=1 // pred_check_branch
      %34 = sbr.rel (0) target = $region17
    $region16: #{tpu_custom_call.1} parent=1 // pred_region
      %35 = dma.done [#allocation6], 128
    $region17: #{tpu_custom_call.1} parent=1 // pred_fallthru
      _
    %v36 = vld [vmem:[#allocation2] sm:$0xff]
    %v37 = vld [vmem:[#allocation5] sm:$0xff]
    %vm38 = vcmask 261120
    %v40 = vsel %vm38, %v36, 0
    %42 = vmatprep.subr.mxu0 0.0
    %43 = vmatpush1.xpose.msra.mxu0 %v40
    %44 = vmatprep.subr.mxu0 0.0
    %45 = vmatpush1.xpose.msra.mxu0 0.0
    %46 = vmatprep.subr.mxu0 0.0
    %47 = vmatpush1.xpose.msra.mxu0 0.0
    %48 = vmatprep.subr.mxu0 0.0
    %49 = vmatpush1.xpose.msra.mxu0 0.0
    %50 = vmatprep.subr.mxu0 0.0
    %51 = vmatpush1.xpose.msra.mxu0 0.0
    %52 = vmatprep.subr.mxu0 0.0
    %53 = vmatpush1.xpose.msra.mxu0 0.0
    %54 = vmatprep.subr.mxu0 0.0
    %55 = vmatpush1.xpose.msra.mxu0 0.0
    %56 = vmatprep.subr.mxu0 0.0
    %57 = vmatpush1.xpose.msra.mxu0 0.0
    %58 = vmatprep.subr.mxu0 0.0
    %59 = vmatpush1.xpose.msra.mxu0 0.0
    %60 = vmatprep.subr.mxu0 0.0
    %61 = vmatpush1.xpose.msra.mxu0 0.0
    %62 = vmatprep.subr.mxu0 0.0
    %63 = vmatpush1.xpose.msra.mxu0 0.0
    %64 = vmatprep.subr.mxu0 0.0
    %65 = vmatpush1.xpose.msra.mxu0 0.0
    %66 = vmatprep.subr.mxu0 0.0
    %67 = vmatpush1.xpose.msra.mxu0 0.0
    %68 = vmatprep.subr.mxu0 0.0
    %69 = vmatpush1.xpose.msra.mxu0 0.0
    %70 = vmatprep.subr.mxu0 0.0
    %71 = vmatpush1.xpose.msra.mxu0 0.0
    %72 = vmatprep.subr.mxu0 0.0
    %73 = vmatpush1.xpose.msra.mxu0 0.0
    %74 = vmatprep.subr.mxu0 0.0
    %75 = vmatpush1.xpose.msra.mxu0 0.0
    %76 = vmatprep.subr.mxu0 0.0
    %77 = vmatpush1.xpose.msra.mxu0 0.0
    %78 = vmatprep.subr.mxu0 0.0
    %79 = vmatpush1.xpose.msra.mxu0 0.0
    %80 = vmatprep.subr.mxu0 0.0
    %81 = vmatpush1.xpose.msra.mxu0 0.0
    %82 = vmatprep.subr.mxu0 0.0
    %83 = vmatpush1.xpose.msra.mxu0 0.0
    %84 = vmatprep.subr.mxu0 0.0
    %85 = vmatpush1.xpose.msra.mxu0 0.0
    %86 = vmatprep.subr.mxu0 0.0
    %87 = vmatpush1.xpose.msra.mxu0 0.0
    %88 = vmatprep.subr.mxu0 0.0
    %89 = vmatpush1.xpose.msra.mxu0 0.0
    %90 = vmatprep.subr.mxu0 0.0
    %91 = vmatpush1.xpose.msra.mxu0 0.0
    %92 = vmatprep.subr.mxu0 0.0
    %93 = vmatpush1.xpose.msra.mxu0 0.0
    %94 = vmatprep.subr.mxu0 0.0
    %95 = vmatpush1.xpose.msra.mxu0 0.0
    %96 = vmatprep.subr.mxu0 0.0
    %97 = vmatpush1.xpose.msra.mxu0 0.0
    %98 = vmatprep.subr.mxu0 0.0
    %99 = vmatpush1.xpose.msra.mxu0 0.0
    %100 = vmatprep.subr.mxu0 0.0
    %101 = vmatpush1.xpose.msra.mxu0 0.0
    %102 = vmatprep.subr.mxu0 0.0
    %103 = vmatpush1.xpose.msra.mxu0 0.0
    %104 = vmatprep.subr.mxu0 0.0
    %105 = vmatpush1.xpose.msra.mxu0 0.0
    %106 = vmatprep.mubr.f32.mxu0 0.0
    %107 = vmatmul.mubr.f32.gmra.mrb[0].mxu0 %v40
    %v108 = vpop.f32.mrb[0].mxu0
    %v109 = vadd.f32 0.0, %v108
    %v110 = vpop.f32.mrb[0].mxu0
    %111 = vdwg.mxu0
    %v113 = vsel %vm38, %v37, 0
    %115 = vmatprep.subr.mxu0 0.0
    %116 = vmatpush1.xpose.msra.mxu0 %v113
    %117 = vmatprep.subr.mxu0 0.0
    %118 = vmatpush1.xpose.msra.mxu0 0.0
    %119 = vmatprep.subr.mxu0 0.0
    %120 = vmatpush1.xpose.msra.mxu0 0.0
    %121 = vmatprep.subr.mxu0 0.0
    %122 = vmatpush1.xpose.msra.mxu0 0.0
    %123 = vmatprep.subr.mxu0 0.0
    %124 = vmatpush1.xpose.msra.mxu0 0.0
    %125 = vmatprep.subr.mxu0 0.0
    %126 = vmatpush1.xpose.msra.mxu0 0.0
    %127 = vmatprep.subr.mxu0 0.0
    %128 = vmatpush1.xpose.msra.mxu0 0.0
    %129 = vmatprep.subr.mxu0 0.0
    %130 = vmatpush1.xpose.msra.mxu0 0.0
    %131 = vmatprep.subr.mxu0 0.0
    %132 = vmatpush1.xpose.msra.mxu0 0.0
    %133 = vmatprep.subr.mxu0 0.0
    %134 = vmatpush1.xpose.msra.mxu0 0.0
    %135 = vmatprep.subr.mxu0 0.0
    %136 = vmatpush1.xpose.msra.mxu0 0.0
    %137 = vmatprep.subr.mxu0 0.0
    %138 = vmatpush1.xpose.msra.mxu0 0.0
    %139 = vmatprep.subr.mxu0 0.0
    %140 = vmatpush1.xpose.msra.mxu0 0.0
    %141 = vmatprep.subr.mxu0 0.0
    %142 = vmatpush1.xpose.msra.mxu0 0.0
    %143 = vmatprep.subr.mxu0 0.0
    %144 = vmatpush1.xpose.msra.mxu0 0.0
    %145 = vmatprep.subr.mxu0 0.0
    %146 = vmatpush1.xpose.msra.mxu0 0.0
    %147 = vmatprep.subr.mxu0 0.0
    %148 = vmatpush1.xpose.msra.mxu0 0.0
    %149 = vmatprep.subr.mxu0 0.0
    %150 = vmatpush1.xpose.msra.mxu0 0.0
    %151 = vmatprep.subr.mxu0 0.0
    %152 = vmatpush1.xpose.msra.mxu0 0.0
    %153 = vmatprep.subr.mxu0 0.0
    %154 = vmatpush1.xpose.msra.mxu0 0.0
    %155 = vmatprep.subr.mxu0 0.0
    %156 = vmatpush1.xpose.msra.mxu0 0.0
    %157 = vmatprep.subr.mxu0 0.0
    %158 = vmatpush1.xpose.msra.mxu0 0.0
    %159 = vmatprep.subr.mxu0 0.0
    %160 = vmatpush1.xpose.msra.mxu0 0.0
    %161 = vmatprep.subr.mxu0 0.0
    %162 = vmatpush1.xpose.msra.mxu0 0.0
    %163 = vmatprep.subr.mxu0 0.0
    %164 = vmatpush1.xpose.msra.mxu0 0.0
    %165 = vmatprep.subr.mxu0 0.0
    %166 = vmatpush1.xpose.msra.mxu0 0.0
    %167 = vmatprep.subr.mxu0 0.0
    %168 = vmatpush1.xpose.msra.mxu0 0.0
    %169 = vmatprep.subr.mxu0 0.0
    %170 = vmatpush1.xpose.msra.mxu0 0.0
    %171 = vmatprep.subr.mxu0 0.0
    %172 = vmatpush1.xpose.msra.mxu0 0.0
    %173 = vmatprep.subr.mxu0 0.0
    %174 = vmatpush1.xpose.msra.mxu0 0.0
    %175 = vmatprep.subr.mxu0 0.0
    %176 = vmatpush1.xpose.msra.mxu0 0.0
    %177 = vmatprep.subr.mxu0 0.0
    %178 = vmatpush1.xpose.msra.mxu0 0.0
    %179 = vmatprep.mubr.f32.mxu0 0.0
    %180 = vmatmul.mubr.f32.gmra.mrb[0].mxu0 %v113
    %v181 = vpop.f32.mrb[0].mxu0
    %v182 = vadd.f32 0.0, %v181
    %v183 = vpop.f32.mrb[0].mxu0
    %184 = vdwg.mxu0
    %185 = vmatprep.subr.mxu0 0.0
    %186 = vmatpush1.xpose.msra.mxu0 %v113
    %187 = vmatprep.subr.mxu0 0.0
    %188 = vmatpush1.xpose.msra.mxu0 0.0
    %189 = vmatprep.subr.mxu0 0.0
    %190 = vmatpush1.xpose.msra.mxu0 0.0
    %191 = vmatprep.subr.mxu0 0.0
    %192 = vmatpush1.xpose.msra.mxu0 0.0
    %193 = vmatprep.subr.mxu0 0.0
    %194 = vmatpush1.xpose.msra.mxu0 0.0
    %195 = vmatprep.subr.mxu0 0.0
    %196 = vmatpush1.xpose.msra.mxu0 0.0
    %197 = vmatprep.subr.mxu0 0.0
    %198 = vmatpush1.xpose.msra.mxu0 0.0
    %199 = vmatprep.subr.mxu0 0.0
    %200 = vmatpush1.xpose.msra.mxu0 0.0
    %201 = vmatprep.subr.mxu0 0.0
    %202 = vmatpush1.xpose.msra.mxu0 0.0
    %203 = vmatprep.subr.mxu0 0.0
    %204 = vmatpush1.xpose.msra.mxu0 0.0
    %205 = vmatprep.subr.mxu0 0.0
    %206 = vmatpush1.xpose.msra.mxu0 0.0
    %207 = vmatprep.subr.mxu0 0.0
    %208 = vmatpush1.xpose.msra.mxu0 0.0
    %209 = vmatprep.subr.mxu0 0.0
    %210 = vmatpush1.xpose.msra.mxu0 0.0
    %211 = vmatprep.subr.mxu0 0.0
    %212 = vmatpush1.xpose.msra.mxu0 0.0
    %213 = vmatprep.subr.mxu0 0.0
    %214 = vmatpush1.xpose.msra.mxu0 0.0
    %215 = vmatprep.subr.mxu0 0.0
    %216 = vmatpush1.xpose.msra.mxu0 0.0
    %217 = vmatprep.subr.mxu0 0.0
    %218 = vmatpush1.xpose.msra.mxu0 0.0
    %219 = vmatprep.subr.mxu0 0.0
    %220 = vmatpush1.xpose.msra.mxu0 0.0
    %221 = vmatprep.subr.mxu0 0.0
    %222 = vmatpush1.xpose.msra.mxu0 0.0
    %223 = vmatprep.subr.mxu0 0.0
    %224 = vmatpush1.xpose.msra.mxu0 0.0
    %225 = vmatprep.subr.mxu0 0.0
    %226 = vmatpush1.xpose.msra.mxu0 0.0
    %227 = vmatprep.subr.mxu0 0.0
    %228 = vmatpush1.xpose.msra.mxu0 0.0
    %229 = vmatprep.subr.mxu0 0.0
    %230 = vmatpush1.xpose.msra.mxu0 0.0
    %231 = vmatprep.subr.mxu0 0.0
    %232 = vmatpush1.xpose.msra.mxu0 0.0
    %233 = vmatprep.subr.mxu0 0.0
    %234 = vmatpush1.xpose.msra.mxu0 0.0
    %235 = vmatprep.subr.mxu0 0.0
    %236 = vmatpush1.xpose.msra.mxu0 0.0
    %237 = vmatprep.subr.mxu0 0.0
    %238 = vmatpush1.xpose.msra.mxu0 0.0
    %239 = vmatprep.subr.mxu0 0.0
    %240 = vmatpush1.xpose.msra.mxu0 0.0
    %241 = vmatprep.subr.mxu0 0.0
    %242 = vmatpush1.xpose.msra.mxu0 0.0
    %243 = vmatprep.subr.mxu0 0.0
    %244 = vmatpush1.xpose.msra.mxu0 0.0
    %245 = vmatprep.subr.mxu0 0.0
    %246 = vmatpush1.xpose.msra.mxu0 0.0
    %247 = vmatprep.subr.mxu0 0.0
    %248 = vmatpush1.xpose.msra.mxu0 0.0
    %249 = vmatprep.mubr.f32.mxu0 0.0
    %250 = vmatmul.mubr.f32.gmra.mrb[0].mxu0 %v40
    %v251 = vpop.f32.mrb[0].mxu0
    %v252 = vadd.f32 0.0, %v251
    %v253 = vpop.f32.mrb[0].mxu0
    %254 = vdwg.mxu0
    %v255 = vmul.f32 %v36, %v36
    %v256 = vsel %vm38, %v255, 0.0
    %257 = vadd.xlane.f32.xlu0 %v256
    %v258 = vpop.xlane.xlu0 %257
    %v259 = vmul.f32 %v37, %v37
    %v260 = vsel %vm38, %v259, 0.0
    %261 = vadd.xlane.f32.xlu0 %v260
    %v262 = vpop.xlane.xlu0 %261
    %263 = vxpose.xlu0.b32.start [1/16] %v258, 128
    %264 = vxpose.xlu0.b32.cont [2/16] 0.0, 128
    %265 = vxpose.xlu0.b32.cont [3/16] 0.0, 128
    %266 = vxpose.xlu0.b32.cont [4/16] 0.0, 128
    %267 = vxpose.xlu0.b32.cont [5/16] 0.0, 128
    %268 = vxpose.xlu0.b32.cont [6/16] 0.0, 128
    %269 = vxpose.xlu0.b32.cont [7/16] 0.0, 128
    %270 = vxpose.xlu0.b32.cont [8/16] 0.0, 128
    %271 = vxpose.xlu0.b32.cont [9/16] 0.0, 128
    %272 = vxpose.xlu0.b32.cont [10/16] 0.0, 128
    %273 = vxpose.xlu0.b32.cont [11/16] 0.0, 128
    %274 = vxpose.xlu0.b32.cont [12/16] 0.0, 128
    %275 = vxpose.xlu0.b32.cont [13/16] 0.0, 128
    %276 = vxpose.xlu0.b32.cont [14/16] 0.0, 128
    %277 = vxpose.xlu0.b32.cont [15/16] 0.0, 128
    %278 = vxpose.xlu0.b32.end [16/16] 0.0, 128
    %v279 = vpop.trf.xlu0
    %v280 = vpop.trf.xlu0
    %v281 = vpop.trf.xlu0
    %v282 = vpop.trf.xlu0
    %v283 = vpop.trf.xlu0
    %v284 = vpop.trf.xlu0
    %v285 = vpop.trf.xlu0
    %v286 = vpop.trf.xlu0
    %v287 = vpop.trf.xlu0
    %v288 = vpop.trf.xlu0
    %v289 = vpop.trf.xlu0
    %v290 = vpop.trf.xlu0
    %v291 = vpop.trf.xlu0
    %v292 = vpop.trf.xlu0
    %v293 = vpop.trf.xlu0
    %v294 = vpop.trf.xlu0
    %v295 = vlaneseq
    %v296 = vshrl.u32 %v295, 7
    %v297 = vsub.s32 0, %v296
    %v298 = vrot.slane %v279, %v297
    %v299 = vadd.f32 %v258, %v298
    %v300 = vmul.f32 %v109, 2.0
    %v301 = vsub.f32 %v299, %v300
    %v302 = vmax.f32 %v301, 0.0
    %303 = vxpose.xlu0.b32.start [1/16] %v262, 128
    %304 = vxpose.xlu0.b32.cont [2/16] 0.0, 128
    %305 = vxpose.xlu0.b32.cont [3/16] 0.0, 128
    %306 = vxpose.xlu0.b32.cont [4/16] 0.0, 128
    %307 = vxpose.xlu0.b32.cont [5/16] 0.0, 128
    %308 = vxpose.xlu0.b32.cont [6/16] 0.0, 128
    %309 = vxpose.xlu0.b32.cont [7/16] 0.0, 128
    %310 = vxpose.xlu0.b32.cont [8/16] 0.0, 128
    %311 = vxpose.xlu0.b32.cont [9/16] 0.0, 128
    %312 = vxpose.xlu0.b32.cont [10/16] 0.0, 128
    %313 = vxpose.xlu0.b32.cont [11/16] 0.0, 128
    %314 = vxpose.xlu0.b32.cont [12/16] 0.0, 128
    %315 = vxpose.xlu0.b32.cont [13/16] 0.0, 128
    %316 = vxpose.xlu0.b32.cont [14/16] 0.0, 128
    %317 = vxpose.xlu0.b32.cont [15/16] 0.0, 128
    %318 = vxpose.xlu0.b32.end [16/16] 0.0, 128
    %v319 = vpop.trf.xlu0
    %v320 = vpop.trf.xlu0
    %v321 = vpop.trf.xlu0
    %v322 = vpop.trf.xlu0
    %v323 = vpop.trf.xlu0
    %v324 = vpop.trf.xlu0
    %v325 = vpop.trf.xlu0
    %v326 = vpop.trf.xlu0
    %v327 = vpop.trf.xlu0
    %v328 = vpop.trf.xlu0
    %v329 = vpop.trf.xlu0
    %v330 = vpop.trf.xlu0
    %v331 = vpop.trf.xlu0
    %v332 = vpop.trf.xlu0
    %v333 = vpop.trf.xlu0
    %v334 = vpop.trf.xlu0
    %v335 = vlaneseq
    %v336 = vshrl.u32 %v335, 7
    %v337 = vsub.s32 0, %v336
    %v338 = vrot.slane %v319, %v337
    %v339 = vadd.f32 %v262, %v338
    %v340 = vmul.f32 %v182, 2.0
    %v341 = vsub.f32 %v339, %v340
    %v342 = vmax.f32 %v341, 0.0
    %v343 = vadd.f32 %v258, %v338
    %v344 = vmul.f32 %v252, 2.0
    %v345 = vsub.f32 %v343, %v344
    %v346 = vmax.f32 %v345, 0.0
    %vm347 = vcmask 64512
    %v348 = vsel %vm347, %v302, 0.0
    %349 = vadd.xlane.f32.xlu0 %v348
    %v350 = vpop.xlane.xlu0 %349
    %v351 = vrot.slane %v350, 4
    %v352 = vadd.f32 %v350, %v351
    %v353 = vrot.slane %v352, 2
    %v354 = vadd.f32 %v352, %v353
    %v355 = vrot.slane %v354, 1
    %v356 = vadd.f32 %v354, %v355
    %s357 = vtos %v356
    %v358 = vsel %vm347, %v342, 0.0
    %359 = vadd.xlane.f32.xlu0 %v358
    %v360 = vpop.xlane.xlu0 %359
    %v361 = vrot.slane %v360, 4
    %v362 = vadd.f32 %v360, %v361
    %v363 = vrot.slane %v362, 2
    %v364 = vadd.f32 %v362, %v363
    %v365 = vrot.slane %v364, 1
    %v366 = vadd.f32 %v364, %v365
    %s367 = vtos %v366
    %s368 = sadd.f32 %s357, %s367
    %v369 = vsel %vm347, %v346, 0.0
    %370 = vadd.xlane.f32.xlu0 %v369
    %v371 = vpop.xlane.xlu0 %370
    %v372 = vrot.slane %v371, 4
    %v373 = vadd.f32 %v371, %v372
    %v374 = vrot.slane %v373, 2
    %v375 = vadd.f32 %v373, %v374
    %v376 = vrot.slane %v375, 1
    %v377 = vadd.f32 %v375, %v376
    %s378 = vtos %v377
    %s379 = smul.f32 %s378, 2.0
    %s380 = sadd.f32 %s368, %s379
    %s381 = smul.f32 %s380, 0.004166667
    %s382 = smul.f32 %s381, 0.25
    %s383 = smul.f32 %s382, 16.0
    %v384 = vstv %s383
    %v385 = vrcp.pop %v384
    %s386 = vtos %v385
    %s387 = smul.f32 -1.0, %s386
    %v388 = vstv %s387
    %v389 = vmul.f32 %v302, %v388
    %v390 = vmul.f32 %v389, 1.442695
    %v391 = vpow.pop %v390
    %v392 = vmul.f32 %v342, %v388
    %v393 = vmul.f32 %v392, 1.442695
    %v394 = vpow.pop %v393
    %v395 = vmul.f32 %v346, %v388
    %v396 = vmul.f32 %v395, 1.442695
    %v397 = vpow.pop %v396
    %v398 = vsel %vm347, %v391, 0.0
    %399 = vadd.xlane.f32.xlu0 %v398
    %v400 = vpop.xlane.xlu0 %399
    %v401 = vrot.slane %v400, 4
    %v402 = vadd.f32 %v400, %v401
    %v403 = vrot.slane %v402, 2
    %v404 = vadd.f32 %v402, %v403
    %v405 = vrot.slane %v404, 1
    %v406 = vadd.f32 %v404, %v405
    %s407 = vtos %v406
    %v408 = vsel %vm347, %v394, 0.0
    %409 = vadd.xlane.f32.xlu0 %v408
    %v410 = vpop.xlane.xlu0 %409
    %v411 = vrot.slane %v410, 4
    %v412 = vadd.f32 %v410, %v411
    %v413 = vrot.slane %v412, 2
    %v414 = vadd.f32 %v412, %v413
    %v415 = vrot.slane %v414, 1
    %v416 = vadd.f32 %v414, %v415
    %s417 = vtos %v416
    %s418 = sadd.f32 %s407, %s417
    %v419 = vsel %vm347, %v397, 0.0
    %420 = vadd.xlane.f32.xlu0 %v419
    %v421 = vpop.xlane.xlu0 %420
    %v422 = vrot.slane %v421, 4
    %v423 = vadd.f32 %v421, %v422
    %v424 = vrot.slane %v423, 2
    %v425 = vadd.f32 %v423, %v424
    %v426 = vrot.slane %v425, 1
    %v427 = vadd.f32 %v425, %v426
    %s428 = vtos %v427
    %s429 = smul.f32 %s428, 2.0
    %s430 = ssub.f32 %s418, %s429
    %v431 = vmul.f32 %v391, %v391
    %v432 = vmul.f32 %v394, %v394
    %v433 = vmul.f32 %v397, %v397
    %v434 = vsel %vm347, %v431, 0.0
    %435 = vadd.xlane.f32.xlu0 %v434
    %v436 = vpop.xlane.xlu0 %435
    %v437 = vrot.slane %v436, 4
    %v438 = vadd.f32 %v436, %v437
    %v439 = vrot.slane %v438, 2
    %v440 = vadd.f32 %v438, %v439
    %v441 = vrot.slane %v440, 1
    %v442 = vadd.f32 %v440, %v441
    %s443 = vtos %v442
    %v444 = vsel %vm347, %v432, 0.0
    %445 = vadd.xlane.f32.xlu0 %v444
    %v446 = vpop.xlane.xlu0 %445
    %v447 = vrot.slane %v446, 4
    %v448 = vadd.f32 %v446, %v447
    %v449 = vrot.slane %v448, 2
    %v450 = vadd.f32 %v448, %v449
    %v451 = vrot.slane %v450, 1
    %v452 = vadd.f32 %v450, %v451
    %s453 = vtos %v452
    %s454 = sadd.f32 %s443, %s453
    %v455 = vsel %vm347, %v433, 0.0
    %456 = vadd.xlane.f32.xlu0 %v455
    %v457 = vpop.xlane.xlu0 %456
    %v458 = vrot.slane %v457, 4
    %v459 = vadd.f32 %v457, %v458
    %v460 = vrot.slane %v459, 2
    %v461 = vadd.f32 %v459, %v460
    %v462 = vrot.slane %v461, 1
    %v463 = vadd.f32 %v461, %v462
    %s464 = vtos %v463
    %s465 = smul.f32 %s464, 2.0
    %s466 = ssub.f32 %s454, %s465
    %s467 = sadd.f32 %s430, %s466
    %v468 = vmul.f32 %v431, %v431
    %v469 = vmul.f32 %v432, %v432
    %v470 = vmul.f32 %v433, %v433
    %v471 = vsel %vm347, %v468, 0.0
    %472 = vadd.xlane.f32.xlu0 %v471
    %v473 = vpop.xlane.xlu0 %472
    %v474 = vrot.slane %v473, 4
    %v475 = vadd.f32 %v473, %v474
    %v476 = vrot.slane %v475, 2
    %v477 = vadd.f32 %v475, %v476
    %v478 = vrot.slane %v477, 1
    %v479 = vadd.f32 %v477, %v478
    %s480 = vtos %v479
    %v481 = vsel %vm347, %v469, 0.0
    %482 = vadd.xlane.f32.xlu0 %v481
    %v483 = vpop.xlane.xlu0 %482
    %v484 = vrot.slane %v483, 4
    %v485 = vadd.f32 %v483, %v484
    %v486 = vrot.slane %v485, 2
    %v487 = vadd.f32 %v485, %v486
    %v488 = vrot.slane %v487, 1
    %v489 = vadd.f32 %v487, %v488
    %s490 = vtos %v489
    %s491 = sadd.f32 %s480, %s490
    %v492 = vsel %vm347, %v470, 0.0
    %493 = vadd.xlane.f32.xlu0 %v492
    %v494 = vpop.xlane.xlu0 %493
    %v495 = vrot.slane %v494, 4
    %v496 = vadd.f32 %v494, %v495
    %v497 = vrot.slane %v496, 2
    %v498 = vadd.f32 %v496, %v497
    %v499 = vrot.slane %v498, 1
    %v500 = vadd.f32 %v498, %v499
    %s501 = vtos %v500
    %s502 = smul.f32 %s501, 2.0
    %s503 = ssub.f32 %s491, %s502
    %s504 = sadd.f32 %s467, %s503
    %v505 = vmul.f32 %v468, %v468
    %v506 = vmul.f32 %v469, %v469
    %v507 = vmul.f32 %v470, %v470
    %v508 = vsel %vm347, %v505, 0.0
    %509 = vadd.xlane.f32.xlu0 %v508
    %v510 = vpop.xlane.xlu0 %509
    %v511 = vrot.slane %v510, 4
    %v512 = vadd.f32 %v510, %v511
    %v513 = vrot.slane %v512, 2
    %v514 = vadd.f32 %v512, %v513
    %v515 = vrot.slane %v514, 1
    %v516 = vadd.f32 %v514, %v515
    %s517 = vtos %v516
    %v518 = vsel %vm347, %v506, 0.0
    %519 = vadd.xlane.f32.xlu0 %v518
    %v520 = vpop.xlane.xlu0 %519
    %v521 = vrot.slane %v520, 4
    %v522 = vadd.f32 %v520, %v521
    %v523 = vrot.slane %v522, 2
    %v524 = vadd.f32 %v522, %v523
    %v525 = vrot.slane %v524, 1
    %v526 = vadd.f32 %v524, %v525
    %s527 = vtos %v526
    %s528 = sadd.f32 %s517, %s527
    %v529 = vsel %vm347, %v507, 0.0
    %530 = vadd.xlane.f32.xlu0 %v529
    %v531 = vpop.xlane.xlu0 %530
    %v532 = vrot.slane %v531, 4
    %v533 = vadd.f32 %v531, %v532
    %v534 = vrot.slane %v533, 2
    %v535 = vadd.f32 %v533, %v534
    %v536 = vrot.slane %v535, 1
    %v537 = vadd.f32 %v535, %v536
    %s538 = vtos %v537
    %s539 = smul.f32 %s538, 2.0
    %s540 = ssub.f32 %s528, %s539
    %s541 = sadd.f32 %s504, %s540
    %v542 = vmul.f32 %v505, %v505
    %v543 = vmul.f32 %v506, %v506
    %v544 = vmul.f32 %v507, %v507
    %v545 = vsel %vm347, %v542, 0.0
    %546 = vadd.xlane.f32.xlu0 %v545
    %v547 = vpop.xlane.xlu0 %546
    %v548 = vrot.slane %v547, 4
    %v549 = vadd.f32 %v547, %v548
    %v550 = vrot.slane %v549, 2
    %v551 = vadd.f32 %v549, %v550
    %v552 = vrot.slane %v551, 1
    %v553 = vadd.f32 %v551, %v552
    %s554 = vtos %v553
    %v555 = vsel %vm347, %v543, 0.0
    %556 = vadd.xlane.f32.xlu0 %v555
    %v557 = vpop.xlane.xlu0 %556
    %v558 = vrot.slane %v557, 4
    %v559 = vadd.f32 %v557, %v558
    %v560 = vrot.slane %v559, 2
    %v561 = vadd.f32 %v559, %v560
    %v562 = vrot.slane %v561, 1
    %v563 = vadd.f32 %v561, %v562
    %s564 = vtos %v563
    %s565 = sadd.f32 %s554, %s564
    %v566 = vsel %vm347, %v544, 0.0
    %567 = vadd.xlane.f32.xlu0 %v566
    %v568 = vpop.xlane.xlu0 %567
    %v569 = vrot.slane %v568, 4
    %v570 = vadd.f32 %v568, %v569
    %v571 = vrot.slane %v570, 2
    %v572 = vadd.f32 %v570, %v571
    %v573 = vrot.slane %v572, 1
    %v574 = vadd.f32 %v572, %v573
    %s575 = vtos %v574
    %s576 = smul.f32 %s575, 2.0
    %s577 = ssub.f32 %s565, %s576
    %s578 = sadd.f32 %s541, %s577
    %s579 = smul.f32 %s578, 0.015625
    %s580 = scalar_lea.smem [#allocation7], 0
    %581 = sst [smem:[%s580]] %s579
    // Predicated region
    $region18: #{tpu_custom_call.1} parent=1 // pred_check
      _
    $region19: #{tpu_custom_call.1} parent=1 // pred_check_branch
      %583 = sbr.rel (0) target = $region21
    $region20: #{tpu_custom_call.1} parent=1 // pred_region
      %s585 = ssub.s32 16, 16
      %586 = vsyncadd [#allocation4], %s585
      %589 = dma.smem_to_hbm [#allocation7], 16, %s2, [#allocation4]
    $region21: #{tpu_custom_call.1} parent=1 // pred_fallthru
      _
    // Predicated region
    $region22: #{tpu_custom_call.1} parent=1 // pred_check
      _
    $region23: #{tpu_custom_call.1} parent=1 // pred_check_branch
      %591 = sbr.rel (0) target = $region25
    $region24: #{tpu_custom_call.1} parent=1 // pred_region
      %592 = dma.done [#allocation4], 16
    $region25: #{tpu_custom_call.1} parent=1 // pred_fallthru
      _
    %593 = sfence
    %594 = vsyncpa [#allocation3], 1
    %595 = vsyncpa [#allocation6], 1
    %596 = vsyncpa [#allocation4], 1

</llo_original>
